<compile_context>
chip_gen: v7x
topology: tpu7x:2x2x1
jax: 0.10.0
libtpu: 0.0.40
codegen_flags: <defaults>
</compile_context>

<pallas_src>
import functools

import jax
import jax.numpy as jnp
from jax.experimental import pallas as pl
from jax.experimental.pallas import tpu as pltpu


def _rnn_attention_kernel(*refs, method):
    """One batch tile: x block (TB,S,H), state block (TB,H)."""
    if method == "general":
        (x_ref, s_ref, wa_ref, wc_ctx_ref, wc_st_ref, bc_ref,
         hid_ref, attw_ref) = refs
    else:  # "dot"
        (x_ref, s_ref, wc_ctx_ref, wc_st_ref, bc_ref,
         hid_ref, attw_ref) = refs

    x = x_ref[...]                               # (TB, S, H) compute dtype
    s = s_ref[...]                               # (TB, H)    compute dtype
    xf = x.astype(jnp.float32)

    # ---- state projection (general): s_proj[b] = state[b] @ Wa (MXU) -------
    # scores[b,t] = <x[b,t], Wa.T @ state[b]> (+ per-row const from attn bias,
    # which cancels in softmax and is therefore dropped).
    if method == "general":
        s_proj = jnp.dot(s, wa_ref[...],
                         preferred_element_type=jnp.float32)     # (TB, H) f32
    else:
        s_proj = s.astype(jnp.float32)

    # ---- scores: VPU broadcast-mul + lane-axis reduce (MXU stays idle) -----
    scores = jnp.sum(xf * s_proj[:, None, :], axis=-1)           # (TB, S)

    # ---- softmax over S; exact normalization (denom is only (TB, 1)) -------
    m = jnp.max(scores, axis=-1, keepdims=True)
    e = jnp.exp(scores - m)
    denom = jnp.sum(e, axis=-1, keepdims=True)
    attn = e * (1.0 / denom)                                     # (TB, S)

    # ---- context: VPU broadcast-mul + reduce over the sequence axis --------
    context = jnp.sum(attn[:, :, None] * xf, axis=1)             # (TB, H) f32

    # ---- concat layer: two accumulated matmuls (no lane-axis concatenate) --
    out = (jnp.dot(context.astype(wc_ctx_ref.dtype), wc_ctx_ref[...],
                   preferred_element_type=jnp.float32)
           + jnp.dot(s, wc_st_ref[...], preferred_element_type=jnp.float32)
           + bc_ref[...])
    # TODO(synk): the reference's `th.matmul(self.concat_linear(...))` is an
    # invalid single-argument matmul call (and no tanh is applied); we return
    # the concat_linear output, matching the pure-JAX reference below.

    hid_ref[...] = out.astype(hid_ref.dtype)                     # (TB, H)
    attw_ref[...] = attn.astype(attw_ref.dtype)                  # (TB, S)


def prepare_rnn_attention_params(params, method, compute_dtype):
    """One-time weight prep (split / transpose / cast) — hoist out of hot path."""
    H = params["concat_b"].shape[0]
    wc = params["concat_w"]                                   # (H, 2H) torch layout
    prepared = {
        "wc_ctx": wc[:, :H].T.astype(compute_dtype),          # (H, H) for context
        "wc_st": wc[:, H:].T.astype(compute_dtype),           # (H, H) for state
        "bc": params["concat_b"].reshape(1, H).astype(jnp.float32),
    }
    if method == "general":
        # scores use Wa.T @ state  ==  state @ Wa  (weight used un-transposed).
        prepared["wa"] = params["attn_w"].astype(compute_dtype)   # (H, H)
    return prepared


def _vmem_capacity_bytes():
    try:
        return int(pltpu.get_tpu_info().vmem_capacity_bytes)
    except Exception:
        return 64 << 20          # conservative fallback (v7x per-TensorCore)


def _pick_batch_tile(B, S, H, in_bytes, vmem_bytes):
    """Largest batch tile whose (double-buffered) blocks fit a VMEM budget."""
    budget = int(vmem_bytes * 0.6)
    # Grid-invariant weight blocks still get pipeline buffers (2x).
    # TODO(synk): for very large H (>= ~2048 f32) add a K-tiled grid axis
    # instead of holding the full weights resident.
    weight_bytes = 2 * (3 * H * H * in_bytes + H * 4)
    per_row = 2 * (S * H * in_bytes          # x block (double-buffered)
                   + H * in_bytes            # state block
                   + H * 4 + S * 4)          # hidden + attention-weight blocks
    avail = max(budget - weight_bytes, 8 * per_row)
    max_tb = max(8, avail // per_row)
    if B <= max_tb:
        # Whole batch fits; still split into >=2 tiles when big enough so both
        # TensorCores get work on v7x (tiles must be sublane-aligned to 8).
        if B >= 16:
            return ((B + 1) // 2 + 7) // 8 * 8
        return B
    return max(8, min((max_tb // 8) * 8, 4096))


def rnn_attention(rnn_output, rnn_state, params=None, method="general",
                  compute_dtype=jnp.bfloat16, prepared=None, batch_tile=None):
    """Pallas TPU forward for RnnAttention.

    Returns (hidden (B, H) in rnn_output.dtype, attention weights (B, S) f32).
    compute_dtype (default bf16) is the dtype of rnn_output/rnn_state in HBM
    and of the MXU matmul operands; accumulation and softmax stay f32.
    """
    B, S, H = rnn_output.shape
    method = method.lower()

    if prepared is None:
        prepared = prepare_rnn_attention_params(params, method, compute_dtype)

    # Dominant HBM traffic is rnn_output: store it (and the state) in the
    # compute dtype so the main DMA moves half the bytes when bf16.
    x = rnn_output.astype(compute_dtype)
    st = rnn_state.astype(compute_dtype)

    in_bytes = jnp.dtype(compute_dtype).itemsize
    vmem_bytes = _vmem_capacity_bytes()
    if batch_tile is None:
        tb = _pick_batch_tile(B, S, H, in_bytes, vmem_bytes)
    else:
        tb = B if batch_tile >= B else max(8, (batch_tile // 8) * 8)
    grid_b = pl.cdiv(B, tb)   # ragged last block: OOB reads undefined / writes clipped

    # Raise the scoped VMEM limit so the large batch tile actually compiles
    # (~48 MiB on v7x's 64 MiB VMEM, ~96 MiB on v5e/v6e's 128 MiB).
    vmem_limit = int(min(vmem_bytes * 0.75, 100 << 20))

    in_arrays = [x, st]
    in_specs = [
        pl.BlockSpec((tb, S, H), lambda b: (b, 0, 0)),     # rnn_output tile
        pl.BlockSpec((tb, H), lambda b: (b, 0)),           # rnn_state tile
    ]
    if method == "general":
        in_arrays.append(prepared["wa"])
        in_specs.append(pl.BlockSpec((H, H), lambda b: (0, 0)))   # Wa
    in_arrays += [prepared["wc_ctx"], prepared["wc_st"], prepared["bc"]]
    in_specs += [
        pl.BlockSpec((H, H), lambda b: (0, 0)),            # Wc (context half).T
        pl.BlockSpec((H, H), lambda b: (0, 0)),            # Wc (state half).T
        pl.BlockSpec((1, H), lambda b: (0, 0)),            # concat bias
    ]
    # NOTE: outputs are (tb, H) / (tb, S) lane-dense slabs; for best store
    # throughput keep H and S multiples of 128 (toy shapes here are smaller,
    # which is allowed since the blocks equal the full array dims).

    kernel = functools.partial(_rnn_attention_kernel, method=method)
    hidden, weights = pl.pallas_call(
        kernel,
        out_shape=(jax.ShapeDtypeStruct((B, H), rnn_output.dtype),
                   jax.ShapeDtypeStruct((B, S), jnp.float32)),
        grid_spec=pltpu.PrefetchScalarGridSpec(
            num_scalar_prefetch=0,
            grid=(grid_b,),
            in_specs=in_specs,
            out_specs=[
                pl.BlockSpec((tb, H), lambda b: (b, 0)),   # hidden
                pl.BlockSpec((tb, S), lambda b: (b, 0)),   # attention weights
            ],
        ),
        compiler_params=pltpu.CompilerParams(
            dimension_semantics=("parallel",),
            vmem_limit_bytes=vmem_limit),
    )(*in_arrays)

    return hidden, weights


def rnn_attention_ref(rnn_output, rnn_state, params, method="general"):
    """Pure-JAX reference mirroring the PyTorch forward."""
    if method == "general":
        w = rnn_output @ params["attn_w"].T + params["attn_b"]
    else:
        w = rnn_output
    scores = jnp.einsum("bsh,bh->bs", w, rnn_state)
    weights = jax.nn.softmax(scores, axis=1)
    context = jnp.einsum("bsh,bs->bh", rnn_output, weights)
    concat = jnp.concatenate([context, rnn_state], axis=1)
    hidden = concat @ params["concat_w"].T + params["concat_b"]
    return hidden, weights


if __name__ == "__main__":
    B, S, H = 2, 8, 32

    key = jax.random.PRNGKey(0)
    k0, k1, k2, k3, k4, k5 = jax.random.split(key, 6)

    rnn_output = jax.random.normal(k0, (B, S, H), dtype=jnp.float32)
    rnn_state = jax.random.normal(k1, (B, H), dtype=jnp.float32)

    params = {
        "attn_w": jax.random.normal(k2, (H, H), dtype=jnp.float32) * 0.1,
        "attn_b": jax.random.normal(k3, (H,), dtype=jnp.float32) * 0.1,
        "concat_w": jax.random.normal(k4, (H, 2 * H), dtype=jnp.float32) * 0.1,
        "concat_b": jax.random.normal(k5, (H,), dtype=jnp.float32) * 0.1,
    }

    for method in ("general", "dot"):
        hidden_ref, weights_ref = rnn_attention_ref(rnn_output, rnn_state,
                                                    params, method)

        # Exact f32 path (softmax normalization is exact; only reduction-order
        # and the softmax-invariant attn-bias drop differ from the reference).
        hidden, weights = rnn_attention(rnn_output, rnn_state, params, method,
                                        compute_dtype=jnp.float32)
        jax.block_until_ready((hidden, weights))
        assert hidden.shape == (B, H) and weights.shape == (B, S)
        assert jnp.allclose(hidden, hidden_ref, rtol=1e-4, atol=1e-4), method
        assert jnp.allclose(weights, weights_ref, rtol=1e-4, atol=1e-4), method

        # Default bf16-in-HBM path (halves the dominant DMA; f32 accumulation).
        hidden_bf, weights_bf = rnn_attention(rnn_output, rnn_state, params,
                                              method)
        jax.block_until_ready((hidden_bf, weights_bf))
        assert jnp.allclose(hidden_bf, hidden_ref, rtol=6e-2, atol=6e-2), method
        assert jnp.allclose(weights_bf, weights_ref, rtol=6e-2, atol=6e-2), method

    print("KERNEL_OK")
</pallas_src>

<mosaic_0001>
module attributes {stable_mosaic.version = 11 : i64} {
  func.func @_rnn_attention_kernel(%arg0: i32, %arg1: memref<2x8x32xf32, #tpu.memory_space<vmem>>, %arg2: memref<2x32xf32, #tpu.memory_space<vmem>>, %arg3: memref<32x32xf32, #tpu.memory_space<vmem>>, %arg4: memref<32x32xf32, #tpu.memory_space<vmem>>, %arg5: memref<32x32xf32, #tpu.memory_space<vmem>>, %arg6: memref<1x32xf32, #tpu.memory_space<vmem>>, %arg7: memref<2x32xf32, #tpu.memory_space<vmem>>, %arg8: memref<2x8xf32, #tpu.memory_space<vmem>>) attributes {dimension_semantics = [#tpu.dimension_semantics<parallel>], iteration_bounds = array<i64: 1>, scalar_prefetch = 0 : i64, scratch_operands = 0 : i64, tpu.core_type = #tpu.core_type<tc>, window_params = [{transform_indices = @transform_0, window_bounds = array<i64: 2, 8, 32>}, {transform_indices = @transform_1, window_bounds = array<i64: 2, 32>}, {pipeline_mode = #tpu.pipeline_mode<synchronous>, transform_indices = @transform_2, window_bounds = array<i64: 32, 32>}, {pipeline_mode = #tpu.pipeline_mode<synchronous>, transform_indices = @transform_3, window_bounds = array<i64: 32, 32>}, {pipeline_mode = #tpu.pipeline_mode<synchronous>, transform_indices = @transform_4, window_bounds = array<i64: 32, 32>}, {pipeline_mode = #tpu.pipeline_mode<synchronous>, transform_indices = @transform_5, window_bounds = array<i64: 1, 32>}, {transform_indices = @transform_6, window_bounds = array<i64: 2, 32>}, {transform_indices = @transform_7, window_bounds = array<i64: 2, 8>}]} {
    %c0 = arith.constant 0 : index
    %c0_0 = arith.constant 0 : index
    %c0_1 = arith.constant 0 : index
    %0 = vector.load %arg1[%c0, %c0_0, %c0_1] : memref<2x8x32xf32, #tpu.memory_space<vmem>>, vector<2x8x32xf32>
    %c0_2 = arith.constant 0 : index
    %c0_3 = arith.constant 0 : index
    %1 = vector.load %arg2[%c0_2, %c0_3] : memref<2x32xf32, #tpu.memory_space<vmem>>, vector<2x32xf32>
    %c0_4 = arith.constant 0 : index
    %c0_5 = arith.constant 0 : index
    %2 = vector.load %arg3[%c0_4, %c0_5] : memref<32x32xf32, #tpu.memory_space<vmem>>, vector<32x32xf32>
    %cst = arith.constant dense<0.000000e+00> : vector<2x32xf32>
    %3 = tpu.matmul %1, %2, %cst {dimension_numbers = #tpu.dot_dimension_numbers<[1], [0], [0], [1], [0, 0, 1, 1], [], []>} : vector<2x32xf32>, vector<32x32xf32>, vector<2x32xf32> -> vector<2x32xf32>
    %4 = vector.shape_cast %3 : vector<2x32xf32> to vector<2x1x32xf32>
    %5 = vector.broadcast %4 : vector<2x1x32xf32> to vector<2x8x32xf32>
    %6 = arith.mulf %0, %5 : vector<2x8x32xf32>
    %cst_6 = arith.constant dense<0.000000e+00> : vector<2x8xf32>
    %7 = vector.multi_reduction <add>, %6, %cst_6 [2] : vector<2x8x32xf32> to vector<2x8xf32>
    %cst_7 = arith.constant dense<0xFF800000> : vector<2xf32>
    %8 = vector.multi_reduction <maximumf>, %7, %cst_7 [1] : vector<2x8xf32> to vector<2xf32>
    %9 = vector.shape_cast %8 : vector<2xf32> to vector<2x1xf32>
    %10 = vector.broadcast %9 : vector<2x1xf32> to vector<2x8xf32>
    %11 = arith.subf %7, %10 : vector<2x8xf32>
    %12 = math.exp %11 : vector<2x8xf32>
    %cst_8 = arith.constant dense<0.000000e+00> : vector<2xf32>
    %13 = vector.multi_reduction <add>, %12, %cst_8 [1] : vector<2x8xf32> to vector<2xf32>
    %14 = vector.shape_cast %13 : vector<2xf32> to vector<2x1xf32>
    %cst_9 = arith.constant 1.000000e+00 : f32
    %15 = vector.broadcast %cst_9 : f32 to vector<2x1xf32>
    %16 = arith.divf %15, %14 : vector<2x1xf32>
    %17 = vector.broadcast %16 : vector<2x1xf32> to vector<2x8xf32>
    %18 = arith.mulf %12, %17 : vector<2x8xf32>
    %19 = vector.shape_cast %18 : vector<2x8xf32> to vector<2x8x1xf32>
    %20 = vector.broadcast %19 : vector<2x8x1xf32> to vector<2x8x32xf32>
    %21 = arith.mulf %20, %0 : vector<2x8x32xf32>
    %cst_10 = arith.constant dense<0.000000e+00> : vector<2x32xf32>
    %22 = vector.multi_reduction <add>, %21, %cst_10 [1] : vector<2x8x32xf32> to vector<2x32xf32>
    %c0_11 = arith.constant 0 : index
    %c0_12 = arith.constant 0 : index
    %23 = vector.load %arg4[%c0_11, %c0_12] : memref<32x32xf32, #tpu.memory_space<vmem>>, vector<32x32xf32>
    %cst_13 = arith.constant dense<0.000000e+00> : vector<2x32xf32>
    %24 = tpu.matmul %22, %23, %cst_13 {dimension_numbers = #tpu.dot_dimension_numbers<[1], [0], [0], [1], [0, 0, 1, 1], [], []>} : vector<2x32xf32>, vector<32x32xf32>, vector<2x32xf32> -> vector<2x32xf32>
    %c0_14 = arith.constant 0 : index
    %c0_15 = arith.constant 0 : index
    %25 = vector.load %arg5[%c0_14, %c0_15] : memref<32x32xf32, #tpu.memory_space<vmem>>, vector<32x32xf32>
    %cst_16 = arith.constant dense<0.000000e+00> : vector<2x32xf32>
    %26 = tpu.matmul %1, %25, %cst_16 {dimension_numbers = #tpu.dot_dimension_numbers<[1], [0], [0], [1], [0, 0, 1, 1], [], []>} : vector<2x32xf32>, vector<32x32xf32>, vector<2x32xf32> -> vector<2x32xf32>
    %27 = arith.addf %24, %26 : vector<2x32xf32>
    %c0_17 = arith.constant 0 : index
    %c0_18 = arith.constant 0 : index
    %28 = vector.load %arg6[%c0_17, %c0_18] : memref<1x32xf32, #tpu.memory_space<vmem>>, vector<1x32xf32>
    %29 = vector.broadcast %28 : vector<1x32xf32> to vector<2x32xf32>
    %30 = arith.addf %27, %29 : vector<2x32xf32>
    %c0_19 = arith.constant 0 : index
    %c0_20 = arith.constant 0 : index
    %31 = vector.load %arg7[%c0_19, %c0_20] : memref<2x32xf32, #tpu.memory_space<vmem>>, vector<2x32xf32>
    tpu.vector_store %arg7[%c0_19, %c0_20], %30 {strides = array<i32>} : memref<2x32xf32, #tpu.memory_space<vmem>>, vector<2x32xf32>,
    %c0_21 = arith.constant 0 : index
    %c0_22 = arith.constant 0 : index
    %32 = vector.load %arg8[%c0_21, %c0_22] : memref<2x8xf32, #tpu.memory_space<vmem>>, vector<2x8xf32>
    tpu.vector_store %arg8[%c0_21, %c0_22], %18 {strides = array<i32>} : memref<2x8xf32, #tpu.memory_space<vmem>>, vector<2x8xf32>,
    return
  }
  func.func @transform_0(%arg0: i32) -> (i32, i32, i32) {
    %c0_i32 = arith.constant 0 : i32
    %c0_i32_0 = arith.constant 0 : i32
    %c0_i32_1 = arith.constant 0 : i32
    return %arg0, %c0_i32, %c0_i32_0 : i32, i32, i32
  }
  func.func @transform_1(%arg0: i32) -> (i32, i32) {
    %c0_i32 = arith.constant 0 : i32
    %c0_i32_0 = arith.constant 0 : i32
    return %arg0, %c0_i32 : i32, i32
  }
  func.func @transform_2(%arg0: i32) -> (i32, i32) {
    %c0_i32 = arith.constant 0 : i32
    %c0_i32_0 = arith.constant 0 : i32
    %c0_i32_1 = arith.constant 0 : i32
    return %c0_i32, %c0_i32_0 : i32, i32
  }
  func.func @transform_3(%arg0: i32) -> (i32, i32) {
    %c0_i32 = arith.constant 0 : i32
    %c0_i32_0 = arith.constant 0 : i32
    %c0_i32_1 = arith.constant 0 : i32
    return %c0_i32, %c0_i32_0 : i32, i32
  }
  func.func @transform_4(%arg0: i32) -> (i32, i32) {
    %c0_i32 = arith.constant 0 : i32
    %c0_i32_0 = arith.constant 0 : i32
    %c0_i32_1 = arith.constant 0 : i32
    return %c0_i32, %c0_i32_0 : i32, i32
  }
  func.func @transform_5(%arg0: i32) -> (i32, i32) {
    %c0_i32 = arith.constant 0 : i32
    %c0_i32_0 = arith.constant 0 : i32
    %c0_i32_1 = arith.constant 0 : i32
    return %c0_i32, %c0_i32_0 : i32, i32
  }
  func.func @transform_6(%arg0: i32) -> (i32, i32) {
    %c0_i32 = arith.constant 0 : i32
    %c0_i32_0 = arith.constant 0 : i32
    return %arg0, %c0_i32 : i32, i32
  }
  func.func @transform_7(%arg0: i32) -> (i32, i32) {
    %c0_i32 = arith.constant 0 : i32
    %c0_i32_0 = arith.constant 0 : i32
    return %arg0, %c0_i32 : i32, i32
  }
}

</mosaic_0001>

<llo_original>
// kernel: tpu_custom_call.1
$region0: #{tpu_custom_call.1}
  #allocation0 [shape = 'u32[]', space=smem, size = 0x4, offset = 0x4, fixed_abs, tag = 'smem constant byte address 0x4 - core index']
  #allocation1 [shape = 'u32[144,128]{1,0:T(1,128)}', space=vmem, size = 0x12000, scoped, tag = 'internal scratch']
  %s0 = inlined_call_operand.hbm [shape: f32[2,8,32], index: 0, kind: input, shape index: {}]
  %s1 = inlined_call_operand.vmem [shape: f32[2,32], index: 1, kind: input, shape index: {}]
  %s2 = inlined_call_operand.hbm [shape: f32[32,32], index: 2, kind: input, shape index: {}]
  %s3 = inlined_call_operand.hbm [shape: f32[32,32], index: 3, kind: input, shape index: {}]
  %s4 = inlined_call_operand.hbm [shape: f32[32,32], index: 4, kind: input, shape index: {}]
  %s5 = inlined_call_operand.vmem [shape: f32[1,32], index: 5, kind: input, shape index: {}]
  %s6 = inlined_call_operand.hbm [shape: f32[2,32], index: 6, kind: output, shape index: {0}]
  %s7 = inlined_call_operand.hbm [shape: f32[2,8], index: 7, kind: output, shape index: {1}]
  %8 = xla_tuple %s6, %s7
  %s9 = sld [smem:[#allocation0]]
  $region58: #{tpu_custom_call.1} parent=0
    _
  %s11 = ssub.s32 1, %s9
  %s12 = scalar_select 0, %s11, %s9
  $region1: #{tpu_custom_call.1} parent=0
    #allocation2 [shape = 'u8[8192]{0}', space=vmem, size = 0x2000, scoped, tag = 'input window, operand 0, single buffered']
    #allocation3 [shape = 's32[1]{0}', space=sflag, size = 0x4, scoped, tag = 'scoped memory for tpu_custom_call.1']
    #allocation4 [shape = 's32[1]{0}', space=sflag, size = 0x4, scoped, tag = 'scoped memory for tpu_custom_call.1']
    #allocation5 [shape = 'u8[16384]{0}', space=vmem, size = 0x4000, scoped, tag = 'input window, operand 2, single buffered']
    #allocation6 [shape = 's32[1]{0}', space=sflag, size = 0x4, scoped, tag = 'scoped memory for tpu_custom_call.1']
    #allocation7 [shape = 'u8[16384]{0}', space=vmem, size = 0x4000, scoped, tag = 'input window, operand 3, single buffered']
    #allocation8 [shape = 'u8[16384]{0}', space=vmem, size = 0x4000, scoped, tag = 'input window, operand 4, single buffered']
    #allocation9 [shape = 's32[1]{0}', space=sflag, size = 0x4, scoped, tag = 'scoped memory for tpu_custom_call.1']
    #allocation10 [shape = 'u8[1024]{0}', space=vmem, size = 0x400, scoped, tag = 'output window, operand 0, single buffered']
    #allocation11 [shape = 'u8[1024]{0}', space=vmem, size = 0x400, scoped, tag = 'output window, operand 1, single buffered']
    #allocation12 [shape = 's32[1]{0}', space=sflag, size = 0x4, scoped, tag = 'scoped memory for tpu_custom_call.1']
    %13 = vsyncpa [#allocation3], 0
    %14 = vsyncpa [#allocation6], 0
    %15 = vsyncpa [#allocation9], 0
    %16 = vsyncpa [#allocation4], 0
    %17 = vsyncpa [#allocation12], 0
    // Predicated region
    $region2: #{tpu_custom_call.1} parent=1 // pred_check
      _
    $region3: #{tpu_custom_call.1} parent=1 // pred_check_branch
      %19 = sbr.rel (0) target = $region5
    $region4: #{tpu_custom_call.1} parent=1 // pred_region
      %s21 = ssub.s32 256, 256
      %22 = vsyncadd [#allocation3], %s21
      %s23 = sshll.u32 [#allocation2], 4
      %s24 = int_to_ptr.vmem [resolvable:$true] %s23
      %29 = dma.hbm_to_vmem [thread:$0]  %s0, 256, %s24, [#allocation3], 128, 128, 8
    $region5: #{tpu_custom_call.1} parent=1 // pred_fallthru
      _
    // Predicated region
    $region6: #{tpu_custom_call.1} parent=1 // pred_check
      _
    $region7: #{tpu_custom_call.1} parent=1 // pred_check_branch
      %31 = sbr.rel (0) target = $region9
    $region8: #{tpu_custom_call.1} parent=1 // pred_region
      _
    $region9: #{tpu_custom_call.1} parent=1 // pred_fallthru
      _
    // Predicated region
    $region10: #{tpu_custom_call.1} parent=1 // pred_check
      _
    $region11: #{tpu_custom_call.1} parent=1 // pred_check_branch
      %33 = sbr.rel (0) target = $region13
    $region12: #{tpu_custom_call.1} parent=1 // pred_region
      %s35 = ssub.s32 512, 512
      %36 = vsyncadd [#allocation6], %s35
      %s37 = sshll.u32 [#allocation5], 4
      %s38 = int_to_ptr.vmem [resolvable:$true] %s37
      %43 = dma.hbm_to_vmem [thread:$0]  %s2, 512, %s38, [#allocation6], 128, 128, 8
    $region13: #{tpu_custom_call.1} parent=1 // pred_fallthru
      _
    // Predicated region
    $region14: #{tpu_custom_call.1} parent=1 // pred_check
      _
    $region15: #{tpu_custom_call.1} parent=1 // pred_check_branch
      %45 = sbr.rel (0) target = $region17
    $region16: #{tpu_custom_call.1} parent=1 // pred_region
      %s47 = ssub.s32 512, 512
      %48 = vsyncadd [#allocation6], %s47
      %s49 = sshll.u32 [#allocation7], 4
      %s50 = int_to_ptr.vmem [resolvable:$true] %s49
      %55 = dma.hbm_to_vmem [thread:$0]  %s3, 512, %s50, [#allocation6], 128, 128, 8
    $region17: #{tpu_custom_call.1} parent=1 // pred_fallthru
      _
    // Predicated region
    $region18: #{tpu_custom_call.1} parent=1 // pred_check
      _
    $region19: #{tpu_custom_call.1} parent=1 // pred_check_branch
      %57 = sbr.rel (0) target = $region21
    $region20: #{tpu_custom_call.1} parent=1 // pred_region
      %s59 = ssub.s32 512, 512
      %60 = vsyncadd [#allocation9], %s59
      %s61 = sshll.u32 [#allocation8], 4
      %s62 = int_to_ptr.vmem [resolvable:$true] %s61
      %67 = dma.hbm_to_vmem [thread:$0]  %s4, 512, %s62, [#allocation9], 128, 128, 8
    $region21: #{tpu_custom_call.1} parent=1 // pred_fallthru
      _
    // Predicated region
    $region22: #{tpu_custom_call.1} parent=1 // pred_check
      _
    $region23: #{tpu_custom_call.1} parent=1 // pred_check_branch
      %69 = sbr.rel (0) target = $region25
    $region24: #{tpu_custom_call.1} parent=1 // pred_region
      _
    $region25: #{tpu_custom_call.1} parent=1 // pred_fallthru
      _
    // Predicated region
    $region26: #{tpu_custom_call.1} parent=1 // pred_check
      _
    $region27: #{tpu_custom_call.1} parent=1 // pred_check_branch
      %71 = sbr.rel (0) target = $region29
    $region28: #{tpu_custom_call.1} parent=1 // pred_region
      %72 = dma.done [#allocation3], 256
    $region29: #{tpu_custom_call.1} parent=1 // pred_fallthru
      _
    // Predicated region
    $region30: #{tpu_custom_call.1} parent=1 // pred_check
      _
    $region31: #{tpu_custom_call.1} parent=1 // pred_check_branch
      %74 = sbr.rel (0) target = $region33
    $region32: #{tpu_custom_call.1} parent=1 // pred_region
      %75 = dma.done [#allocation6], 512
    $region33: #{tpu_custom_call.1} parent=1 // pred_fallthru
      _
    // Predicated region
    $region34: #{tpu_custom_call.1} parent=1 // pred_check
      _
    $region35: #{tpu_custom_call.1} parent=1 // pred_check_branch
      %77 = sbr.rel (0) target = $region37
    $region36: #{tpu_custom_call.1} parent=1 // pred_region
      %78 = dma.done [#allocation6], 512
    $region37: #{tpu_custom_call.1} parent=1 // pred_fallthru
      _
    // Predicated region
    $region38: #{tpu_custom_call.1} parent=1 // pred_check
      _
    $region39: #{tpu_custom_call.1} parent=1 // pred_check_branch
      %80 = sbr.rel (0) target = $region41
    $region40: #{tpu_custom_call.1} parent=1 // pred_region
      %81 = dma.done [#allocation9], 512
    $region41: #{tpu_custom_call.1} parent=1 // pred_fallthru
      _
    %v82 = vld [vmem:[#allocation2] sm:$0xff]
    %v83 = vld [vmem:[#allocation2 + $0x8] sm:$0xff]
    %v84 = vld [vmem:[%s1] sm:$0x3]
    %v85 = vld [vmem:[#allocation5] sm:$0xff]
    %v86 = vld [vmem:[#allocation5 + $0x8] sm:$0xff]
    %v87 = vld [vmem:[#allocation5 + $0x10] sm:$0xff]
    %v88 = vld [vmem:[#allocation5 + $0x18] sm:$0xff]
    %vm89 = vcmask 261120
    %v91 = vsel %vm89, %v84, 0
    %93 = vmatprep.subr.mxu0 0.0
    %94 = vmatpush1.msra.mxu0 %v85
    %95 = vmatprep.subr.mxu0 0.0
    %96 = vmatpush1.msra.mxu0 %v86
    %97 = vmatprep.subr.mxu0 0.0
    %98 = vmatpush1.msra.mxu0 %v87
    %99 = vmatprep.subr.mxu0 0.0
    %100 = vmatpush1.msra.mxu0 %v88
    %101 = vmatprep.subr.mxu0 0.0
    %102 = vmatpush1.msra.mxu0 0.0
    %103 = vmatprep.subr.mxu0 0.0
    %104 = vmatpush1.msra.mxu0 0.0
    %105 = vmatprep.subr.mxu0 0.0
    %106 = vmatpush1.msra.mxu0 0.0
    %107 = vmatprep.subr.mxu0 0.0
    %108 = vmatpush1.msra.mxu0 0.0
    %109 = vmatprep.subr.mxu0 0.0
    %110 = vmatpush1.msra.mxu0 0.0
    %111 = vmatprep.subr.mxu0 0.0
    %112 = vmatpush1.msra.mxu0 0.0
    %113 = vmatprep.subr.mxu0 0.0
    %114 = vmatpush1.msra.mxu0 0.0
    %115 = vmatprep.subr.mxu0 0.0
    %116 = vmatpush1.msra.mxu0 0.0
    %117 = vmatprep.subr.mxu0 0.0
    %118 = vmatpush1.msra.mxu0 0.0
    %119 = vmatprep.subr.mxu0 0.0
    %120 = vmatpush1.msra.mxu0 0.0
    %121 = vmatprep.subr.mxu0 0.0
    %122 = vmatpush1.msra.mxu0 0.0
    %123 = vmatprep.subr.mxu0 0.0
    %124 = vmatpush1.msra.mxu0 0.0
    %125 = vmatprep.subr.mxu0 0.0
    %126 = vmatpush1.msra.mxu0 0.0
    %127 = vmatprep.subr.mxu0 0.0
    %128 = vmatpush1.msra.mxu0 0.0
    %129 = vmatprep.subr.mxu0 0.0
    %130 = vmatpush1.msra.mxu0 0.0
    %131 = vmatprep.subr.mxu0 0.0
    %132 = vmatpush1.msra.mxu0 0.0
    %133 = vmatprep.subr.mxu0 0.0
    %134 = vmatpush1.msra.mxu0 0.0
    %135 = vmatprep.subr.mxu0 0.0
    %136 = vmatpush1.msra.mxu0 0.0
    %137 = vmatprep.subr.mxu0 0.0
    %138 = vmatpush1.msra.mxu0 0.0
    %139 = vmatprep.subr.mxu0 0.0
    %140 = vmatpush1.msra.mxu0 0.0
    %141 = vmatprep.subr.mxu0 0.0
    %142 = vmatpush1.msra.mxu0 0.0
    %143 = vmatprep.subr.mxu0 0.0
    %144 = vmatpush1.msra.mxu0 0.0
    %145 = vmatprep.subr.mxu0 0.0
    %146 = vmatpush1.msra.mxu0 0.0
    %147 = vmatprep.subr.mxu0 0.0
    %148 = vmatpush1.msra.mxu0 0.0
    %149 = vmatprep.subr.mxu0 0.0
    %150 = vmatpush1.msra.mxu0 0.0
    %151 = vmatprep.subr.mxu0 0.0
    %152 = vmatpush1.msra.mxu0 0.0
    %153 = vmatprep.subr.mxu0 0.0
    %154 = vmatpush1.msra.mxu0 0.0
    %155 = vmatprep.subr.mxu0 0.0
    %156 = vmatpush1.msra.mxu0 0.0
    %157 = vmatprep.mubr.f32.mxu0 0.0
    %158 = vmatmul.mubr.f32.gmra.mrb[0].mxu0 %v91
    %v159 = vpop.f32.mrb[0].mxu0
    %v160 = vadd.f32 0.0, %v159
    %v161 = vpop.f32.mrb[0].mxu0
    %162 = vdwg.mxu0
    %v165 = vunpack.c.l.s4 1966171168
    %v166 = vunpack.c.0.s8 %v165
    %v167 = vlaneseq
    %v168 = vshrl.u32 %v167, 7
    %v169 = vsub.s32 %v166, %v168
    %v170 = vrot.slane %v160, %v169
    %v171 = vcombine.high %v170, %v170
    %v173 = vunpack.c.l.s4 1966171168
    %v174 = vunpack.c.0.s8 %v173
    %v175 = vlaneseq
    %v176 = vshrl.u32 %v175, 7
    %v177 = vsub.s32 %v174, %v176
    %v178 = vrot.slane %v170, %v177
    %v180 = vunpack.c.l.s4 1966171168
    %v181 = vunpack.c.0.s8 %v180
    %v182 = vlaneseq
    %v183 = vshrl.u32 %v182, 7
    %v184 = vsub.s32 %v181, %v183
    %v185 = vrot.slane %v171, %v184
    %v186 = vlaneseq
    %v187 = vshrl.u32 %v186, 7
    %v188 = vsub.s32 0, %v187
    %v189 = vrot.slane %v178, %v188
    %v190 = vlaneseq
    %v191 = vshrl.u32 %v190, 7
    %v192 = vsub.s32 0, %v191
    %v193 = vrot.slane %v185, %v192
    %v196 = vmul.f32 %v82, %v189
    %v197 = vmul.f32 %v83, %v193
    %v198 = vsel %vm89, %v196, 0.0
    %199 = vadd.xlane.f32.xlu0 %v198
    %v200 = vpop.xlane.xlu0 %199
    %v201 = vsel %vm89, %v197, 0.0
    %202 = vadd.xlane.f32.xlu0 %v201
    %v203 = vpop.xlane.xlu0 %202
    %v206 = vlaneseq
    %v207 = vand.u32 %v206, 127
    %v208 = vlaneseq
    %v209 = vshrl.u32 %v208, 7
    %v210 = vsub.s32 %v207, %v209
    %v211 = vrot.slane %v200, %v210
    %v212 = vlaneseq
    %v213 = vshrl.u32 %v212, 7
    %v214 = vsub.s32 %v207, %v213
    %v215 = vrot.slane %v203, %v214
    %vm216 = vcmask 1041409
    %v217 = vsel %vm216, %v215, %v211
    %vm219 = vcmask 58368
    %v220 = vsel %vm219, %v217, -inf
    %221 = vmax.xlane.f32.xlu0 %v220
    %v222 = vpop.xlane.xlu0 %221
    %v224 = vlaneseq
    %v225 = vshrl.u32 %v224, 7
    %v226 = vsub.s32 0, %v225
    %v227 = vrot.slane %v222, %v226
    %v228 = vlaneseq
    %v229 = vshrl.u32 %v228, 7
    %v230 = vsub.s32 1, %v229
    %v231 = vrot.slane %v222, %v230
    %v234 = vsub.f32 %v200, %v227
    %v235 = vsub.f32 %v203, %v231
    %v236 = vmul.f32 %v234, 1.442695
    %v237 = vpow.pop %v236
    %v238 = vmul.f32 %v235, 1.442695
    %v239 = vpow.pop %v238
    %242 = vset.pattern.permute.xlu0 0
    %243 = vperm.xlu0 %242, %v237
    %v244 = vpop.permute.xlu0 %243
    %245 = vset.pattern.permute.xlu0 0
    %246 = vperm.xlu0 %245, %v239
    %v247 = vpop.permute.xlu0 %246
    %v248 = vlaneseq
    %v249 = vshrl.u32 %v248, 7
    %v250 = vsub.s32 %v207, %v249
    %v251 = vrot.slane %v244, %v250
    %v252 = vlaneseq
    %v253 = vshrl.u32 %v252, 7
    %v254 = vsub.s32 %v207, %v253
    %v255 = vrot.slane %v247, %v254
    %v256 = vsel %vm216, %v255, %v251
    %v258 = vsel %vm219, %v256, 0.0
    %259 = vadd.xlane.f32.xlu0 %v258
    %v260 = vpop.xlane.xlu0 %259
    %v261 = vrcp.pop %v260
    %v262 = vmul.f32 1.0, %v261
    %v264 = vlaneseq
    %v265 = vshrl.u32 %v264, 7
    %v266 = vsub.s32 0, %v265
    %v267 = vrot.slane %v262, %v266
    %v268 = vlaneseq
    %v269 = vshrl.u32 %v268, 7
    %v270 = vsub.s32 1, %v269
    %v271 = vrot.slane %v262, %v270
    %v274 = vmul.f32 %v237, %v267
    %v275 = vmul.f32 %v239, %v271
    %277 = vset.pattern.permute.xlu0 0
    %278 = vperm.xlu0 %277, %v274
    %v279 = vpop.permute.xlu0 %278
    %282 = vset.pattern.permute.xlu0 0
    %283 = vperm.xlu0 %282, %v275
    %v284 = vpop.permute.xlu0 %283
    %v286 = vmul.f32 %v279, %v82
    %v287 = vmul.f32 %v284, %v83
    %v288 = vsel %vm89, %v286, 0.0
    %v289 = vrot.slane %v288, 4
    %v290 = vadd.f32 %v288, %v289
    %v291 = vrot.slane %v290, 2
    %v292 = vadd.f32 %v290, %v291
    %v293 = vrot.slane %v292, 1
    %v294 = vadd.f32 %v292, %v293
    %v295 = vsel %vm89, %v287, 0.0
    %v296 = vrot.slane %v295, 4
    %v297 = vadd.f32 %v295, %v296
    %v298 = vrot.slane %v297, 2
    %v299 = vadd.f32 %v297, %v298
    %v300 = vrot.slane %v299, 1
    %v301 = vadd.f32 %v299, %v300
    %v302 = vld [vmem:[#allocation7] sm:$0xff]
    %v303 = vld [vmem:[#allocation7 + $0x8] sm:$0xff]
    %v304 = vld [vmem:[#allocation7 + $0x10] sm:$0xff]
    %v305 = vld [vmem:[#allocation7 + $0x18] sm:$0xff]
    %v306 = vld [vmem:[#allocation8] sm:$0xff]
    %v307 = vld [vmem:[#allocation8 + $0x8] sm:$0xff]
    %v308 = vld [vmem:[#allocation8 + $0x10] sm:$0xff]
    %v309 = vld [vmem:[#allocation8 + $0x18] sm:$0xff]
    %310 = vmatprep.subr.mxu0 0.0
    %311 = vmatpush1.msra.mxu0 %v306
    %312 = vmatprep.subr.mxu0 0.0
    %313 = vmatpush1.msra.mxu0 %v307
    %314 = vmatprep.subr.mxu0 0.0
    %315 = vmatpush1.msra.mxu0 %v308
    %316 = vmatprep.subr.mxu0 0.0
    %317 = vmatpush1.msra.mxu0 %v309
    %318 = vmatprep.subr.mxu0 0.0
    %319 = vmatpush1.msra.mxu0 0.0
    %320 = vmatprep.subr.mxu0 0.0
    %321 = vmatpush1.msra.mxu0 0.0
    %322 = vmatprep.subr.mxu0 0.0
    %323 = vmatpush1.msra.mxu0 0.0
    %324 = vmatprep.subr.mxu0 0.0
    %325 = vmatpush1.msra.mxu0 0.0
    %326 = vmatprep.subr.mxu0 0.0
    %327 = vmatpush1.msra.mxu0 0.0
    %328 = vmatprep.subr.mxu0 0.0
    %329 = vmatpush1.msra.mxu0 0.0
    %330 = vmatprep.subr.mxu0 0.0
    %331 = vmatpush1.msra.mxu0 0.0
    %332 = vmatprep.subr.mxu0 0.0
    %333 = vmatpush1.msra.mxu0 0.0
    %334 = vmatprep.subr.mxu0 0.0
    %335 = vmatpush1.msra.mxu0 0.0
    %336 = vmatprep.subr.mxu0 0.0
    %337 = vmatpush1.msra.mxu0 0.0
    %338 = vmatprep.subr.mxu0 0.0
    %339 = vmatpush1.msra.mxu0 0.0
    %340 = vmatprep.subr.mxu0 0.0
    %341 = vmatpush1.msra.mxu0 0.0
    %342 = vmatprep.subr.mxu0 0.0
    %343 = vmatpush1.msra.mxu0 0.0
    %344 = vmatprep.subr.mxu0 0.0
    %345 = vmatpush1.msra.mxu0 0.0
    %346 = vmatprep.subr.mxu0 0.0
    %347 = vmatpush1.msra.mxu0 0.0
    %348 = vmatprep.subr.mxu0 0.0
    %349 = vmatpush1.msra.mxu0 0.0
    %350 = vmatprep.subr.mxu0 0.0
    %351 = vmatpush1.msra.mxu0 0.0
    %352 = vmatprep.subr.mxu0 0.0
    %353 = vmatpush1.msra.mxu0 0.0
    %354 = vmatprep.subr.mxu0 0.0
    %355 = vmatpush1.msra.mxu0 0.0
    %356 = vmatprep.subr.mxu0 0.0
    %357 = vmatpush1.msra.mxu0 0.0
    %358 = vmatprep.subr.mxu0 0.0
    %359 = vmatpush1.msra.mxu0 0.0
    %360 = vmatprep.subr.mxu0 0.0
    %361 = vmatpush1.msra.mxu0 0.0
    %362 = vmatprep.subr.mxu0 0.0
    %363 = vmatpush1.msra.mxu0 0.0
    %364 = vmatprep.subr.mxu0 0.0
    %365 = vmatpush1.msra.mxu0 0.0
    %366 = vmatprep.subr.mxu0 0.0
    %367 = vmatpush1.msra.mxu0 0.0
    %368 = vmatprep.subr.mxu0 0.0
    %369 = vmatpush1.msra.mxu0 0.0
    %370 = vmatprep.subr.mxu0 0.0
    %371 = vmatpush1.msra.mxu0 0.0
    %372 = vmatprep.subr.mxu0 0.0
    %373 = vmatpush1.msra.mxu0 0.0
    %374 = vmatprep.mubr.f32.mxu0 0.0
    %375 = vmatmul.mubr.f32.gmra.mrb[0].mxu0 %v91
    %v376 = vpop.f32.mrb[0].mxu0
    %v377 = vadd.f32 0.0, %v376
    %v378 = vpop.f32.mrb[0].mxu0
    %379 = vdwg.mxu0
    %v382 = vsel %vm216, %v301, %v294
    %v383 = vsel %vm89, %v382, 0
    %385 = vmatprep.subr.mxu0 0.0
    %386 = vmatpush1.msra.mxu0 %v302
    %387 = vmatprep.subr.mxu0 0.0
    %388 = vmatpush1.msra.mxu0 %v303
    %389 = vmatprep.subr.mxu0 0.0
    %390 = vmatpush1.msra.mxu0 %v304
    %391 = vmatprep.subr.mxu0 0.0
    %392 = vmatpush1.msra.mxu0 %v305
    %393 = vmatprep.subr.mxu0 0.0
    %394 = vmatpush1.msra.mxu0 0.0
    %395 = vmatprep.subr.mxu0 0.0
    %396 = vmatpush1.msra.mxu0 0.0
    %397 = vmatprep.subr.mxu0 0.0
    %398 = vmatpush1.msra.mxu0 0.0
    %399 = vmatprep.subr.mxu0 0.0
    %400 = vmatpush1.msra.mxu0 0.0
    %401 = vmatprep.subr.mxu0 0.0
    %402 = vmatpush1.msra.mxu0 0.0
    %403 = vmatprep.subr.mxu0 0.0
    %404 = vmatpush1.msra.mxu0 0.0
    %405 = vmatprep.subr.mxu0 0.0
    %406 = vmatpush1.msra.mxu0 0.0
    %407 = vmatprep.subr.mxu0 0.0
    %408 = vmatpush1.msra.mxu0 0.0
    %409 = vmatprep.subr.mxu0 0.0
    %410 = vmatpush1.msra.mxu0 0.0
    %411 = vmatprep.subr.mxu0 0.0
    %412 = vmatpush1.msra.mxu0 0.0
    %413 = vmatprep.subr.mxu0 0.0
    %414 = vmatpush1.msra.mxu0 0.0
    %415 = vmatprep.subr.mxu0 0.0
    %416 = vmatpush1.msra.mxu0 0.0
    %417 = vmatprep.subr.mxu0 0.0
    %418 = vmatpush1.msra.mxu0 0.0
    %419 = vmatprep.subr.mxu0 0.0
    %420 = vmatpush1.msra.mxu0 0.0
    %421 = vmatprep.subr.mxu0 0.0
    %422 = vmatpush1.msra.mxu0 0.0
    %423 = vmatprep.subr.mxu0 0.0
    %424 = vmatpush1.msra.mxu0 0.0
    %425 = vmatprep.subr.mxu0 0.0
    %426 = vmatpush1.msra.mxu0 0.0
    %427 = vmatprep.subr.mxu0 0.0
    %428 = vmatpush1.msra.mxu0 0.0
    %429 = vmatprep.subr.mxu0 0.0
    %430 = vmatpush1.msra.mxu0 0.0
    %431 = vmatprep.subr.mxu0 0.0
    %432 = vmatpush1.msra.mxu0 0.0
    %433 = vmatprep.subr.mxu0 0.0
    %434 = vmatpush1.msra.mxu0 0.0
    %435 = vmatprep.subr.mxu0 0.0
    %436 = vmatpush1.msra.mxu0 0.0
    %437 = vmatprep.subr.mxu0 0.0
    %438 = vmatpush1.msra.mxu0 0.0
    %439 = vmatprep.subr.mxu0 0.0
    %440 = vmatpush1.msra.mxu0 0.0
    %441 = vmatprep.subr.mxu0 0.0
    %442 = vmatpush1.msra.mxu0 0.0
    %443 = vmatprep.subr.mxu0 0.0
    %444 = vmatpush1.msra.mxu0 0.0
    %445 = vmatprep.subr.mxu0 0.0
    %446 = vmatpush1.msra.mxu0 0.0
    %447 = vmatprep.subr.mxu0 0.0
    %448 = vmatpush1.msra.mxu0 0.0
    %449 = vmatprep.mubr.f32.mxu0 0.0
    %450 = vmatmul.mubr.f32.gmra.mrb[0].mxu0 %v383
    %v451 = vpop.f32.mrb[0].mxu0
    %v452 = vadd.f32 %v377, %v451
    %v453 = vpop.f32.mrb[0].mxu0
    %454 = vdwg.mxu0
    %v455 = vld [vmem:[%s5] sm:$0x1]
    %v457 = vlaneseq
    %v458 = vshrl.u32 %v457, 7
    %v459 = vsub.s32 0, %v458
    %v460 = vrot.slane %v455, %v459
    %v462 = vadd.f32 %v452, %v460
    %vm463 = vcmask 254976
    %464 = vst.msk [vmem:[#allocation10] sm:$0x3] %vm463, %v462
    %v465 = vlaneseq
    %v466 = vshrl.u32 %v465, 7
    %v467 = vsub.s32 %v207, %v466
    %v468 = vrot.slane %v279, %v467
    %v469 = vlaneseq
    %v470 = vshrl.u32 %v469, 7
    %v471 = vsub.s32 %v207, %v470
    %v472 = vrot.slane %v284, %v471
    %v473 = vsel %vm216, %v472, %v468
    %475 = vst.msk [vmem:[#allocation11] sm:$0x3] %vm219, %v473
    // Predicated region
    $region42: #{tpu_custom_call.1} parent=1 // pred_check
      _
    $region43: #{tpu_custom_call.1} parent=1 // pred_check_branch
      %477 = sbr.rel (0) target = $region45
    $region44: #{tpu_custom_call.1} parent=1 // pred_region
      %s479 = ssub.s32 32, 32
      %480 = vsyncadd [#allocation4], %s479
      %s482 = sshll.u32 [#allocation10], 4
      %s483 = int_to_ptr.vmem [resolvable:$true] %s482
      %485 = dma.vmem_to_hbm [thread:$0]  %s483, 32, %s6, [#allocation4]
    $region45: #{tpu_custom_call.1} parent=1 // pred_fallthru
      _
    // Predicated region
    $region46: #{tpu_custom_call.1} parent=1 // pred_check
      _
    $region47: #{tpu_custom_call.1} parent=1 // pred_check_branch
      %487 = sbr.rel (0) target = $region49
    $region48: #{tpu_custom_call.1} parent=1 // pred_region
      %s489 = ssub.s32 32, 32
      %490 = vsyncadd [#allocation12], %s489
      %s492 = sshll.u32 [#allocation11], 4
      %s493 = int_to_ptr.vmem [resolvable:$true] %s492
      %495 = dma.vmem_to_hbm [thread:$0]  %s493, 32, %s7, [#allocation12]
    $region49: #{tpu_custom_call.1} parent=1 // pred_fallthru
      _
    // Predicated region
    $region50: #{tpu_custom_call.1} parent=1 // pred_check
      _
    $region51: #{tpu_custom_call.1} parent=1 // pred_check_branch
      %497 = sbr.rel (0) target = $region53
    $region52: #{tpu_custom_call.1} parent=1 // pred_region
      %498 = dma.done [#allocation4], 32
    $region53: #{tpu_custom_call.1} parent=1 // pred_fallthru
      _
    // Predicated region
    $region54: #{tpu_custom_call.1} parent=1 // pred_check
      _
    $region55: #{tpu_custom_call.1} parent=1 // pred_check_branch
      %500 = sbr.rel (0) target = $region57
    $region56: #{tpu_custom_call.1} parent=1 // pred_region
      %501 = dma.done [#allocation12], 32
    $region57: #{tpu_custom_call.1} parent=1 // pred_fallthru
      _
    %502 = vsyncpa [#allocation3], 1
    %503 = vsyncpa [#allocation6], 1
    %504 = vsyncpa [#allocation9], 1
    %505 = vsyncpa [#allocation4], 1
    %506 = vsyncpa [#allocation12], 1

</llo_original>
